<compile_context>
chip_gen: v7x
topology: tpu7x:2x2x1
jax: 0.10.0
libtpu: 0.0.40
codegen_flags: <defaults>
</compile_context>

<pallas_src>
import numpy as np
import jax
import jax.numpy as jnp
from jax.experimental import pallas as pl
from jax.experimental.pallas import tpu as pltpu

_EPS = 1e-5


# --------------------------------------------------------------------------
# One-time probe: direction / availability of pltpu.roll on the sublane axis.
#   1  -> pltpu.roll(x, s, 0) == jnp.roll(x, s, 0)
#  -1  -> opposite rotation direction
#   0  -> unsupported; fall back to jnp.roll (slice+concat) inside the kernel
# --------------------------------------------------------------------------
_ROLL_MODE_CACHE = None


def _roll_mode():
    global _ROLL_MODE_CACHE
    if _ROLL_MODE_CACHE is not None:
        return _ROLL_MODE_CACHE
    mode = 0
    try:
        def probe(x_ref, o_ref):
            o_ref[...] = pltpu.roll(x_ref[...], shift=1, axis=0)

        x = jnp.arange(16 * 128, dtype=jnp.float32).reshape(16, 128)
        y = jax.device_get(pl.pallas_call(
            probe, out_shape=jax.ShapeDtypeStruct((16, 128), jnp.float32))(x))
        xn = jax.device_get(x)
        if np.array_equal(y, np.roll(xn, 1, axis=0)):
            mode = 1
        elif np.array_equal(y, np.roll(xn, -1, axis=0)):
            mode = -1
    except Exception:
        mode = 0
    _ROLL_MODE_CACHE = mode
    return mode


# --------------------------------------------------------------------------
# Kernel
# --------------------------------------------------------------------------
def _make_kernel(nb, h, cdtype, roll_mode):
    """nb = batch elems per grid step, h = image height, cdtype = matmul dtype."""
    m = nb * h

    def vshift(x2d, s):
        # result[r] = x2d[(r - s) % m]  (jnp.roll semantics, rows shift "down")
        if roll_mode == 0:
            return jnp.roll(x2d, s, axis=0)          # fallback: slice + concat
        shift = s if roll_mode == 1 else (m - s) % m
        return pltpu.roll(x2d, shift=shift, axis=0)  # XLU sublane rotation

    def kernel(x_ref, w1_ref, t1_ref, w2_ref, t2_ref, o_ref):
        # x_ref : (nb, h, W*Cin)   lane-dense row slabs (matmul dtype)
        # w1_ref: (3*W*Cin,  W*Cmid) banded K-stacked weights, BN scale folded
        # w2_ref: (3*W*Cmid, W*Cout)
        # t*_ref: (1, W*C)         folded BN shift (f32, tiled across W)
        # o_ref : (nb, h, W*Cout)  f32

        def conv_block(x2d, w_ref, t_ref):
            # One conv+BN+ReLU block as a single MXU matmul.
            # x2d: (m, L) f32.  The three vertical taps are K-stacked:
            #   xk = [ x(y-1) | x(y) | x(y+1) ]  -> (m, 3L),
            # with zero rows at image boundaries via an iota mask ('same' pad
            # in H).  Horizontal taps / channels / W-padding live in the
            # banded weight built in the wrapper.
            mm, l = x2d.shape
            row = jax.lax.broadcasted_iota(jnp.int32, (mm, l), 0)
            x_prev = jnp.where(row % h == 0, 0.0, vshift(x2d, 1))
            x_next = jnp.where(row % h == h - 1, 0.0, vshift(x2d, m - 1))
            xk = jnp.concatenate([x_prev, x2d, x_next], axis=-1).astype(cdtype)
            acc = jnp.dot(xk, w_ref[...], preferred_element_type=jnp.float32)
            return jnp.maximum(acc + t_ref[...], 0.0)          # f32

        x2d = x_ref[...].reshape(m, x_ref.shape[-1]).astype(jnp.float32)
        mid = conv_block(x2d, w1_ref, t1_ref)                  # (m, W*Cmid) f32
        out = conv_block(mid, w2_ref, t2_ref)                  # (m, W*Cout) f32
        o_ref[...] = out.reshape(nb, h, out.shape[-1]).astype(o_ref.dtype)

    return kernel


# --------------------------------------------------------------------------
# Wrapper helpers
# --------------------------------------------------------------------------
def _fold_bn(gamma, beta, mean, var):
    scale = gamma / jnp.sqrt(var + _EPS)
    shift = beta - mean * scale
    return scale, shift


def _tap_weights(w_oihw, width):
    """PyTorch (Cout, Cin, 3, 3) conv weight -> stacked banded matrices
    (3, W*Cin, W*Cout); taps[dy][xi*Cin+ci, x*Cout+co] = w[co, ci, dy, xi-x+1]
    (zero where the horizontal tap falls outside the 3-wide kernel, which also
    implements the 'same' zero padding along W).  taps[dy] multiplies input
    row (y + dy - 1)."""
    w = jnp.transpose(w_oihw, (2, 3, 1, 0)).astype(jnp.float32)  # (3,3,Cin,Cout)
    kh, kw, cin, cout = w.shape
    xi = jnp.arange(width)
    x = jnp.arange(width)
    dx = jnp.arange(kw)
    sel = (xi[None, :, None] == x[None, None, :] + dx[:, None, None] - 1)
    sel = sel.astype(jnp.float32)                                # (3, W, W)
    taps = []
    for dy in range(kh):
        b = jnp.einsum('dix,dab->iaxb', sel, w[dy])              # (W,Cin,W,Cout)
        taps.append(b.reshape(width * cin, width * cout))
    return jnp.stack(taps, axis=0)                               # (3, W*Cin, W*Cout)


def _banded_weight(w_oihw, width, scale, dtype):
    """Banded K-stacked weight (3*W*Cin, W*Cout) with the BN scale folded into
    the output columns (done in f32, then cast to the matmul dtype).
    Column layout is x*Cout + co (position-major, channel-minor), matching the
    lane-dense activation slabs and the tiled shift vectors."""
    taps = _tap_weights(w_oihw, width)                           # f32
    cout = w_oihw.shape[0]
    col_scale = jnp.tile(scale.astype(jnp.float32), width)       # (W*Cout,)
    taps = taps * col_scale[None, None, :]
    kh, kin, kout = taps.shape
    return taps.reshape(kh * kin, kout).astype(dtype)


def _device_kind():
    try:
        return jax.devices()[0].device_kind.lower()
    except Exception:
        return ""


def _is_v7():
    k = _device_kind()
    return ("v7" in k) or ("7x" in k)


def _num_tensorcores():
    return 2 if _is_v7() else 1


def _vmem_budget_bytes():
    # Conservative per-step budget: v7x has 64 MiB physical VMEM per TC,
    # v5e/v6e have 128 MiB (scoped defaults 16/32 MiB — we raise the limit).
    return (24 << 20) if _is_v7() else (48 << 20)


def _step_vmem_bytes(nb, h, w, cin, cmid, cout, bpe):
    """Rough per-grid-step VMEM estimate: double-buffered x/out blocks,
    (conservatively) double-buffered invariant weights, plus in-kernel f32
    temporaries (shifted copies, K-stacked operands, accumulators)."""
    m = nb * h
    lin, lmid, lout = w * cin, w * cmid, w * cout
    x_blk = m * lin * bpe
    o_blk = m * lout * 4
    wgt = (3 * lin * lmid + 3 * lmid * lout) * bpe + (lmid + lout) * 4
    tmp = m * 4 * (4 * lin + 4 * lmid + 2 * lout) + m * bpe * 3 * (lin + lmid)
    return 2 * (x_blk + o_blk) + 2 * wgt + tmp


def _pick_batch_block(n, h, w, cin, cmid, cout, bpe, num_cores, budget):
    """Batch elements fused per grid step.  Single-TC chips (v5e/v6e): grid is
    a sequential loop, so take the largest block that fits the VMEM budget
    (often the whole batch).  v7x: prefer a grid that splits evenly across the
    2 TensorCores.  Row cap targets a large matmul M per step."""
    row_cap = 2048
    fits = [nb for nb in range(1, n + 1)
            if n % nb == 0 and nb * h <= row_cap
            and _step_vmem_bytes(nb, h, w, cin, cmid, cout, bpe) <= budget]
    if not fits:
        return 1
    if num_cores > 1:
        even = [nb for nb in fits if (n // nb) % num_cores == 0]
        if even:
            return max(even)
    return max(fits)


# --------------------------------------------------------------------------
# Public entry points
# --------------------------------------------------------------------------
def double2dconv_nhwc(x_nhwc, params, *, matmul_dtype=jnp.bfloat16,
                      batch_block=None):
    """Double2DConv forward in NHWC (preferred entry point: no layout transposes).

    x_nhwc: (N, H, W, Cin) float32 -> (N, H, W, Cout) float32.
    """
    n, h, w, cin = x_nhwc.shape
    cmid = params['w1'].shape[0]
    cout = params['w2'].shape[0]

    # Fold BatchNorm (inference) into scale/shift; the scale is folded into
    # the banded weights (in f32), only the shift goes to the kernel.
    s1, t1 = _fold_bn(params['g1'], params['b1'], params['m1'], params['v1'])
    s2, t2 = _fold_bn(params['g2'], params['b2'], params['m2'], params['v2'])

    wk1 = _banded_weight(params['w1'], w, s1, matmul_dtype)   # (3*W*Cin,  W*Cmid)
    wk2 = _banded_weight(params['w2'], w, s2, matmul_dtype)   # (3*W*Cmid, W*Cout)
    t1 = jnp.tile(t1, w).reshape(1, w * cmid).astype(jnp.float32)
    t2 = jnp.tile(t2, w).reshape(1, w * cout).astype(jnp.float32)

    bpe = jnp.dtype(matmul_dtype).itemsize
    cores = _num_tensorcores()
    budget = _vmem_budget_bytes()
    nb = batch_block if batch_block is not None else _pick_batch_block(
        n, h, w, cin, cmid, cout, bpe, cores, budget)
    assert n % nb == 0, (n, nb)

    # Lane-dense row-slab view of the input: (N, H, W*Cin). Free reshape.
    x_slab = x_nhwc.reshape(n, h, w * cin).astype(matmul_dtype)

    roll_mode = _roll_mode()

    need = _step_vmem_bytes(nb, h, w, cin, cmid, cout, bpe)
    cap = (48 << 20) if _is_v7() else (100 << 20)
    vmem_limit = int(max(32 << 20, min(cap, 2 * need)))

    out_slab = pl.pallas_call(
        _make_kernel(nb, h, matmul_dtype, roll_mode),
        out_shape=jax.ShapeDtypeStruct((n, h, w * cout), jnp.float32),
        grid=(n // nb,),
        in_specs=[
            pl.BlockSpec((nb, h, w * cin), lambda i: (i, 0, 0)),
            pl.BlockSpec((3 * w * cin, w * cmid), lambda i: (0, 0)),
            pl.BlockSpec((1, w * cmid), lambda i: (0, 0)),
            pl.BlockSpec((3 * w * cmid, w * cout), lambda i: (0, 0)),
            pl.BlockSpec((1, w * cout), lambda i: (0, 0)),
        ],
        out_specs=pl.BlockSpec((nb, h, w * cout), lambda i: (i, 0, 0)),
        compiler_params=pltpu.CompilerParams(
            dimension_semantics=("parallel",),
            vmem_limit_bytes=vmem_limit),
    )(x_slab, wk1, t1, wk2, t2)

    return out_slab.reshape(n, h, w, cout)


def double2dconv(x_nchw, params, *, matmul_dtype=jnp.bfloat16, batch_block=None):
    """NCHW wrapper matching the PyTorch module's layout convention."""
    x_nhwc = jnp.transpose(x_nchw, (0, 2, 3, 1))
    y = double2dconv_nhwc(x_nhwc, params, matmul_dtype=matmul_dtype,
                          batch_block=batch_block)
    return jnp.transpose(y, (0, 3, 1, 2))


# --------------------------------------------------------------------------
# Pure-JAX/XLA reference (NCHW, same semantics as the PyTorch module in eval)
# --------------------------------------------------------------------------
def _ref_forward(x_nchw, p):
    def block(x, w, g, b, m, v):
        y = jax.lax.conv_general_dilated(
            x, w, window_strides=(1, 1), padding='SAME',
            dimension_numbers=('NCHW', 'OIHW', 'NCHW'))
        scale = (g / jnp.sqrt(v + _EPS))[None, :, None, None]
        shift = (b - m * g / jnp.sqrt(v + _EPS))[None, :, None, None]
        return jnp.maximum(y * scale + shift, 0.0)

    y = block(x_nchw, p['w1'], p['g1'], p['b1'], p['m1'], p['v1'])
    y = block(y, p['w2'], p['g2'], p['b2'], p['m2'], p['v2'])
    return y


if __name__ == "__main__":
    key = jax.random.PRNGKey(0)
    N, Cin, Cout, H, W = 2, 4, 8, 16, 16
    ks = jax.random.split(key, 3)

    x = jax.random.normal(ks[0], (N, Cin, H, W), jnp.float32)

    params = dict(
        w1=0.2 * jax.random.normal(ks[1], (Cout, Cin, 3, 3), jnp.float32),
        g1=1.0 + 0.10 * jnp.arange(Cout, dtype=jnp.float32),
        b1=0.05 * jnp.arange(Cout, dtype=jnp.float32),
        m1=0.01 * jnp.arange(Cout, dtype=jnp.float32),
        v1=1.0 + 0.02 * jnp.arange(Cout, dtype=jnp.float32),
        w2=0.2 * jax.random.normal(ks[2], (Cout, Cout, 3, 3), jnp.float32),
        g2=1.0 - 0.05 * jnp.arange(Cout, dtype=jnp.float32),
        b2=-0.02 * jnp.arange(Cout, dtype=jnp.float32),
        m2=0.03 * jnp.arange(Cout, dtype=jnp.float32),
        v2=1.0 + 0.05 * jnp.arange(Cout, dtype=jnp.float32),
    )

    ref = _ref_forward(x, params)

    # f32 MXU path: tight tolerance.
    out_f32 = jax.block_until_ready(
        double2dconv(x, params, matmul_dtype=jnp.float32))
    assert out_f32.shape == (N, Cout, H, W), out_f32.shape
    err = float(jnp.max(jnp.abs(out_f32 - ref)))
    assert jnp.allclose(out_f32, ref, rtol=1e-4, atol=1e-4), \
        f"f32 max |err| = {err}"

    # Default bf16 MXU path (f32 accumulation; 'mid' is re-quantized to bf16
    # between the two blocks): looser check.
    out_bf16 = jax.block_until_ready(double2dconv(x, params))
    err16 = float(jnp.max(jnp.abs(out_bf16 - ref)))
    assert jnp.allclose(out_bf16, ref, rtol=5e-2, atol=5e-2), \
        f"bf16 max |err| = {err16}"

    print("KERNEL_OK")
</pallas_src>

<mosaic_0001>
module attributes {stable_mosaic.version = 11 : i64} {
  func.func @probe(%arg0: memref<16x128xf32, #tpu.memory_space<vmem>>, %arg1: memref<16x128xf32, #tpu.memory_space<vmem>>) attributes {dimension_semantics = [], scalar_prefetch = 0 : i64, scratch_operands = 0 : i64, tpu.core_type = #tpu.core_type<tc>} {
    %c0 = arith.constant 0 : index
    %c0_0 = arith.constant 0 : index
    %0 = vector.load %arg0[%c0, %c0_0] : memref<16x128xf32, #tpu.memory_space<vmem>>, vector<16x128xf32>
    %c1_i32 = arith.constant 1 : i32
    %1 = tpu.dynamic_rotate %0 by %c1_i32 dim 0 : vector<16x128xf32>, i32 -> vector<16x128xf32>
    %c0_1 = arith.constant 0 : index
    %c0_2 = arith.constant 0 : index
    %2 = vector.load %arg1[%c0_1, %c0_2] : memref<16x128xf32, #tpu.memory_space<vmem>>, vector<16x128xf32>
    tpu.vector_store %arg1[%c0_1, %c0_2], %1 {strides = array<i32>} : memref<16x128xf32, #tpu.memory_space<vmem>>, vector<16x128xf32>,
    return
  }
}

module attributes {stable_mosaic.version = 11 : i64} {
  func.func @kernel(%arg0: i32, %arg1: memref<2x16x64xf32, #tpu.memory_space<vmem>>, %arg2: memref<192x128xf32, #tpu.memory_space<vmem>>, %arg3: memref<1x128xf32, #tpu.memory_space<vmem>>, %arg4: memref<384x128xf32, #tpu.memory_space<vmem>>, %arg5: memref<1x128xf32, #tpu.memory_space<vmem>>, %arg6: memref<2x16x128xf32, #tpu.memory_space<vmem>>) attributes {dimension_semantics = [#tpu.dimension_semantics<parallel>], iteration_bounds = array<i64: 1>, scalar_prefetch = 0 : i64, scratch_operands = 0 : i64, tpu.core_type = #tpu.core_type<tc>, window_params = [{transform_indices = @transform_0, window_bounds = array<i64: 2, 16, 64>}, {pipeline_mode = #tpu.pipeline_mode<synchronous>, transform_indices = @transform_1, window_bounds = array<i64: 192, 128>}, {pipeline_mode = #tpu.pipeline_mode<synchronous>, transform_indices = @transform_2, window_bounds = array<i64: 1, 128>}, {pipeline_mode = #tpu.pipeline_mode<synchronous>, transform_indices = @transform_3, window_bounds = array<i64: 384, 128>}, {pipeline_mode = #tpu.pipeline_mode<synchronous>, transform_indices = @transform_4, window_bounds = array<i64: 1, 128>}, {transform_indices = @transform_5, window_bounds = array<i64: 2, 16, 128>}]} {
    %c0 = arith.constant 0 : index
    %c0_0 = arith.constant 0 : index
    %c0_1 = arith.constant 0 : index
    %0 = vector.load %arg1[%c0, %c0_0, %c0_1] : memref<2x16x64xf32, #tpu.memory_space<vmem>>, vector<2x16x64xf32>
    %1 = vector.shape_cast %0 : vector<2x16x64xf32> to vector<32x64xf32>
    %2 = tpu.iota {dimensions = array<i32: 0>} : vector<32x64xi32>
    %c16_i32 = arith.constant 16 : i32
    %c0_i32 = arith.constant 0 : i32
    %3 = arith.cmpi eq, %c16_i32, %c0_i32 : i32
    %c1_i32 = arith.constant 1 : i32
    %4 = arith.select %3, %c1_i32, %c16_i32 : i32
    %5 = vector.broadcast %4 : i32 to vector<32x64xi32>
    %6 = arith.remsi %2, %5 : vector<32x64xi32>
    %c0_i32_2 = arith.constant 0 : i32
    %7 = vector.broadcast %c0_i32_2 : i32 to vector<32x64xi32>
    %8 = arith.cmpi ne, %6, %7 : vector<32x64xi32>
    %c0_i32_3 = arith.constant 0 : i32
    %9 = vector.broadcast %c0_i32_3 : i32 to vector<32x64xi32>
    %10 = arith.cmpi slt, %6, %9 : vector<32x64xi32>
    %c0_i32_4 = arith.constant 0 : i32
    %11 = arith.cmpi slt, %4, %c0_i32_4 : i32
    %12 = vector.broadcast %11 : i1 to vector<32x64xi1>
    %13 = vector.broadcast %12 : vector<32x64xi1> to vector<32x64xi1>
    %14 = arith.xori %10, %13 : vector<32x64xi1>
    %15 = arith.andi %14, %8 : vector<32x64xi1>
    %16 = vector.broadcast %4 : i32 to vector<32x64xi32>
    %17 = arith.addi %6, %16 : vector<32x64xi32>
    %18 = arith.select %15, %17, %6 : vector<32x64xi1>, vector<32x64xi32>
    %c0_i32_5 = arith.constant 0 : i32
    %19 = vector.broadcast %c0_i32_5 : i32 to vector<32x64xi32>
    %20 = arith.cmpi eq, %18, %19 : vector<32x64xi32>
    %21 = vector.extract_strided_slice %1 {offsets = [31, 0], sizes = [1, 64], strides = [1, 1]} : vector<32x64xf32> to vector<1x64xf32>
    %22 = vector.extract_strided_slice %1 {offsets = [0, 0], sizes = [31, 64], strides = [1, 1]} : vector<32x64xf32> to vector<31x64xf32>
    %23 = tpu.concatenate %21, %22 in 0 : vector<1x64xf32>, vector<31x64xf32> -> vector<32x64xf32>
    %cst = arith.constant 0.000000e+00 : f32
    %24 = vector.broadcast %cst : f32 to vector<32x64xf32>
    %25 = arith.select %20, %24, %23 : vector<32x64xi1>, vector<32x64xf32>
    %c16_i32_6 = arith.constant 16 : i32
    %c0_i32_7 = arith.constant 0 : i32
    %26 = arith.cmpi eq, %c16_i32_6, %c0_i32_7 : i32
    %c1_i32_8 = arith.constant 1 : i32
    %27 = arith.select %26, %c1_i32_8, %c16_i32_6 : i32
    %28 = vector.broadcast %27 : i32 to vector<32x64xi32>
    %29 = arith.remsi %2, %28 : vector<32x64xi32>
    %c0_i32_9 = arith.constant 0 : i32
    %30 = vector.broadcast %c0_i32_9 : i32 to vector<32x64xi32>
    %31 = arith.cmpi ne, %29, %30 : vector<32x64xi32>
    %c0_i32_10 = arith.constant 0 : i32
    %32 = vector.broadcast %c0_i32_10 : i32 to vector<32x64xi32>
    %33 = arith.cmpi slt, %29, %32 : vector<32x64xi32>
    %c0_i32_11 = arith.constant 0 : i32
    %34 = arith.cmpi slt, %27, %c0_i32_11 : i32
    %35 = vector.broadcast %34 : i1 to vector<32x64xi1>
    %36 = vector.broadcast %35 : vector<32x64xi1> to vector<32x64xi1>
    %37 = arith.xori %33, %36 : vector<32x64xi1>
    %38 = arith.andi %37, %31 : vector<32x64xi1>
    %39 = vector.broadcast %27 : i32 to vector<32x64xi32>
    %40 = arith.addi %29, %39 : vector<32x64xi32>
    %41 = arith.select %38, %40, %29 : vector<32x64xi1>, vector<32x64xi32>
    %c15_i32 = arith.constant 15 : i32
    %42 = vector.broadcast %c15_i32 : i32 to vector<32x64xi32>
    %43 = arith.cmpi eq, %41, %42 : vector<32x64xi32>
    %44 = vector.extract_strided_slice %1 {offsets = [1, 0], sizes = [31, 64], strides = [1, 1]} : vector<32x64xf32> to vector<31x64xf32>
    %45 = vector.extract_strided_slice %1 {offsets = [0, 0], sizes = [1, 64], strides = [1, 1]} : vector<32x64xf32> to vector<1x64xf32>
    %46 = tpu.concatenate %44, %45 in 0 : vector<31x64xf32>, vector<1x64xf32> -> vector<32x64xf32>
    %cst_12 = arith.constant 0.000000e+00 : f32
    %47 = vector.broadcast %cst_12 : f32 to vector<32x64xf32>
    %48 = arith.select %43, %47, %46 : vector<32x64xi1>, vector<32x64xf32>
    %49 = tpu.concatenate %25, %1, %48 in 1 : vector<32x64xf32>, vector<32x64xf32>, vector<32x64xf32> -> vector<32x192xf32>
    %c0_13 = arith.constant 0 : index
    %c0_14 = arith.constant 0 : index
    %50 = vector.load %arg2[%c0_13, %c0_14] : memref<192x128xf32, #tpu.memory_space<vmem>>, vector<192x128xf32>
    %cst_15 = arith.constant dense<0.000000e+00> : vector<32x128xf32>
    %51 = tpu.matmul %49, %50, %cst_15 {dimension_numbers = #tpu.dot_dimension_numbers<[1], [0], [0], [1], [0, 0, 1, 1], [], []>} : vector<32x192xf32>, vector<192x128xf32>, vector<32x128xf32> -> vector<32x128xf32>
    %c0_16 = arith.constant 0 : index
    %c0_17 = arith.constant 0 : index
    %52 = vector.load %arg3[%c0_16, %c0_17] : memref<1x128xf32, #tpu.memory_space<vmem>>, vector<1x128xf32>
    %53 = vector.broadcast %52 : vector<1x128xf32> to vector<32x128xf32>
    %54 = arith.addf %51, %53 : vector<32x128xf32>
    %cst_18 = arith.constant 0.000000e+00 : f32
    %55 = vector.broadcast %cst_18 : f32 to vector<32x128xf32>
    %56 = arith.maximumf %54, %55 : vector<32x128xf32>
    %57 = tpu.iota {dimensions = array<i32: 0>} : vector<32x128xi32>
    %c16_i32_19 = arith.constant 16 : i32
    %c0_i32_20 = arith.constant 0 : i32
    %58 = arith.cmpi eq, %c16_i32_19, %c0_i32_20 : i32
    %c1_i32_21 = arith.constant 1 : i32
    %59 = arith.select %58, %c1_i32_21, %c16_i32_19 : i32
    %60 = vector.broadcast %59 : i32 to vector<32x128xi32>
    %61 = arith.remsi %57, %60 : vector<32x128xi32>
    %c0_i32_22 = arith.constant 0 : i32
    %62 = vector.broadcast %c0_i32_22 : i32 to vector<32x128xi32>
    %63 = arith.cmpi ne, %61, %62 : vector<32x128xi32>
    %c0_i32_23 = arith.constant 0 : i32
    %64 = vector.broadcast %c0_i32_23 : i32 to vector<32x128xi32>
    %65 = arith.cmpi slt, %61, %64 : vector<32x128xi32>
    %c0_i32_24 = arith.constant 0 : i32
    %66 = arith.cmpi slt, %59, %c0_i32_24 : i32
    %67 = vector.broadcast %66 : i1 to vector<32x128xi1>
    %68 = vector.broadcast %67 : vector<32x128xi1> to vector<32x128xi1>
    %69 = arith.xori %65, %68 : vector<32x128xi1>
    %70 = arith.andi %69, %63 : vector<32x128xi1>
    %71 = vector.broadcast %59 : i32 to vector<32x128xi32>
    %72 = arith.addi %61, %71 : vector<32x128xi32>
    %73 = arith.select %70, %72, %61 : vector<32x128xi1>, vector<32x128xi32>
    %c0_i32_25 = arith.constant 0 : i32
    %74 = vector.broadcast %c0_i32_25 : i32 to vector<32x128xi32>
    %75 = arith.cmpi eq, %73, %74 : vector<32x128xi32>
    %76 = vector.extract_strided_slice %56 {offsets = [31, 0], sizes = [1, 128], strides = [1, 1]} : vector<32x128xf32> to vector<1x128xf32>
    %77 = vector.extract_strided_slice %56 {offsets = [0, 0], sizes = [31, 128], strides = [1, 1]} : vector<32x128xf32> to vector<31x128xf32>
    %78 = tpu.concatenate %76, %77 in 0 : vector<1x128xf32>, vector<31x128xf32> -> vector<32x128xf32>
    %cst_26 = arith.constant 0.000000e+00 : f32
    %79 = vector.broadcast %cst_26 : f32 to vector<32x128xf32>
    %80 = arith.select %75, %79, %78 : vector<32x128xi1>, vector<32x128xf32>
    %c16_i32_27 = arith.constant 16 : i32
    %c0_i32_28 = arith.constant 0 : i32
    %81 = arith.cmpi eq, %c16_i32_27, %c0_i32_28 : i32
    %c1_i32_29 = arith.constant 1 : i32
    %82 = arith.select %81, %c1_i32_29, %c16_i32_27 : i32
    %83 = vector.broadcast %82 : i32 to vector<32x128xi32>
    %84 = arith.remsi %57, %83 : vector<32x128xi32>
    %c0_i32_30 = arith.constant 0 : i32
    %85 = vector.broadcast %c0_i32_30 : i32 to vector<32x128xi32>
    %86 = arith.cmpi ne, %84, %85 : vector<32x128xi32>
    %c0_i32_31 = arith.constant 0 : i32
    %87 = vector.broadcast %c0_i32_31 : i32 to vector<32x128xi32>
    %88 = arith.cmpi slt, %84, %87 : vector<32x128xi32>
    %c0_i32_32 = arith.constant 0 : i32
    %89 = arith.cmpi slt, %82, %c0_i32_32 : i32
    %90 = vector.broadcast %89 : i1 to vector<32x128xi1>
    %91 = vector.broadcast %90 : vector<32x128xi1> to vector<32x128xi1>
    %92 = arith.xori %88, %91 : vector<32x128xi1>
    %93 = arith.andi %92, %86 : vector<32x128xi1>
    %94 = vector.broadcast %82 : i32 to vector<32x128xi32>
    %95 = arith.addi %84, %94 : vector<32x128xi32>
    %96 = arith.select %93, %95, %84 : vector<32x128xi1>, vector<32x128xi32>
    %c15_i32_33 = arith.constant 15 : i32
    %97 = vector.broadcast %c15_i32_33 : i32 to vector<32x128xi32>
    %98 = arith.cmpi eq, %96, %97 : vector<32x128xi32>
    %99 = vector.extract_strided_slice %56 {offsets = [1, 0], sizes = [31, 128], strides = [1, 1]} : vector<32x128xf32> to vector<31x128xf32>
    %100 = vector.extract_strided_slice %56 {offsets = [0, 0], sizes = [1, 128], strides = [1, 1]} : vector<32x128xf32> to vector<1x128xf32>
    %101 = tpu.concatenate %99, %100 in 0 : vector<31x128xf32>, vector<1x128xf32> -> vector<32x128xf32>
    %cst_34 = arith.constant 0.000000e+00 : f32
    %102 = vector.broadcast %cst_34 : f32 to vector<32x128xf32>
    %103 = arith.select %98, %102, %101 : vector<32x128xi1>, vector<32x128xf32>
    %104 = tpu.concatenate %80, %56, %103 in 1 : vector<32x128xf32>, vector<32x128xf32>, vector<32x128xf32> -> vector<32x384xf32>
    %c0_35 = arith.constant 0 : index
    %c0_36 = arith.constant 0 : index
    %105 = vector.load %arg4[%c0_35, %c0_36] : memref<384x128xf32, #tpu.memory_space<vmem>>, vector<384x128xf32>
    %cst_37 = arith.constant dense<0.000000e+00> : vector<32x128xf32>
    %106 = tpu.matmul %104, %105, %cst_37 {dimension_numbers = #tpu.dot_dimension_numbers<[1], [0], [0], [1], [0, 0, 1, 1], [], []>} : vector<32x384xf32>, vector<384x128xf32>, vector<32x128xf32> -> vector<32x128xf32>
    %c0_38 = arith.constant 0 : index
    %c0_39 = arith.constant 0 : index
    %107 = vector.load %arg5[%c0_38, %c0_39] : memref<1x128xf32, #tpu.memory_space<vmem>>, vector<1x128xf32>
    %108 = vector.broadcast %107 : vector<1x128xf32> to vector<32x128xf32>
    %109 = arith.addf %106, %108 : vector<32x128xf32>
    %cst_40 = arith.constant 0.000000e+00 : f32
    %110 = vector.broadcast %cst_40 : f32 to vector<32x128xf32>
    %111 = arith.maximumf %109, %110 : vector<32x128xf32>
    %112 = vector.shape_cast %111 : vector<32x128xf32> to vector<2x16x128xf32>
    %c0_41 = arith.constant 0 : index
    %c0_42 = arith.constant 0 : index
    %c0_43 = arith.constant 0 : index
    %113 = vector.load %arg6[%c0_41, %c0_42, %c0_43] : memref<2x16x128xf32, #tpu.memory_space<vmem>>, vector<2x16x128xf32>
    tpu.vector_store %arg6[%c0_41, %c0_42, %c0_43], %112 {strides = array<i32>} : memref<2x16x128xf32, #tpu.memory_space<vmem>>, vector<2x16x128xf32>,
    return
  }
  func.func @transform_0(%arg0: i32) -> (i32, i32, i32) {
    %c0_i32 = arith.constant 0 : i32
    %c0_i32_0 = arith.constant 0 : i32
    %c0_i32_1 = arith.constant 0 : i32
    return %arg0, %c0_i32, %c0_i32_0 : i32, i32, i32
  }
  func.func @transform_1(%arg0: i32) -> (i32, i32) {
    %c0_i32 = arith.constant 0 : i32
    %c0_i32_0 = arith.constant 0 : i32
    %c0_i32_1 = arith.constant 0 : i32
    return %c0_i32, %c0_i32_0 : i32, i32
  }
  func.func @transform_2(%arg0: i32) -> (i32, i32) {
    %c0_i32 = arith.constant 0 : i32
    %c0_i32_0 = arith.constant 0 : i32
    %c0_i32_1 = arith.constant 0 : i32
    return %c0_i32, %c0_i32_0 : i32, i32
  }
  func.func @transform_3(%arg0: i32) -> (i32, i32) {
    %c0_i32 = arith.constant 0 : i32
    %c0_i32_0 = arith.constant 0 : i32
    %c0_i32_1 = arith.constant 0 : i32
    return %c0_i32, %c0_i32_0 : i32, i32
  }
  func.func @transform_4(%arg0: i32) -> (i32, i32) {
    %c0_i32 = arith.constant 0 : i32
    %c0_i32_0 = arith.constant 0 : i32
    %c0_i32_1 = arith.constant 0 : i32
    return %c0_i32, %c0_i32_0 : i32, i32
  }
  func.func @transform_5(%arg0: i32) -> (i32, i32, i32) {
    %c0_i32 = arith.constant 0 : i32
    %c0_i32_0 = arith.constant 0 : i32
    %c0_i32_1 = arith.constant 0 : i32
    return %arg0, %c0_i32, %c0_i32_0 : i32, i32, i32
  }
}

</mosaic_0001>

<llo_original>
// kernel: tpu_custom_call.1
$region0: #{tpu_custom_call.1}
  #allocation0 [shape = 'u32[]', space=smem, size = 0x4, offset = 0x4, fixed_abs, tag = 'smem constant byte address 0x4 - core index']
  #allocation1 [shape = 'u32[144,128]{1,0:T(1,128)}', space=vmem, size = 0x12000, scoped, tag = 'internal scratch']
  %s0 = inlined_call_operand.hbm [shape: f32[16,128], index: 0, kind: input, shape index: {}]
  %s1 = inlined_call_operand.hbm [shape: f32[16,128], index: 1, kind: output, shape index: {}]
  %s2 = sld [smem:[#allocation0]]
  $region18: #{tpu_custom_call.1} parent=0
    _
  %s4 = ssub.s32 1, %s2
  %s5 = scalar_select 0, %s4, %s2
  $region1: #{tpu_custom_call.1} parent=0
    #allocation2 [shape = 'u8[8192]{0}', space=vmem, size = 0x2000, scoped, tag = 'input window, operand 0, single buffered']
    #allocation3 [shape = 's32[1]{0}', space=sflag, size = 0x4, scoped, tag = 'scoped memory for tpu_custom_call.1']
    #allocation4 [shape = 's32[1]{0}', space=sflag, size = 0x4, scoped, tag = 'scoped memory for tpu_custom_call.1']
    #allocation5 [shape = 'u8[8192]{0}', space=vmem, size = 0x2000, scoped, tag = 'output window, operand 0, single buffered']
    %6 = vsyncpa [#allocation3], 0
    %7 = vsyncpa [#allocation4], 0
    // Predicated region
    $region2: #{tpu_custom_call.1} parent=1 // pred_check
      _
    $region3: #{tpu_custom_call.1} parent=1 // pred_check_branch
      %9 = sbr.rel (0) target = $region5
    $region4: #{tpu_custom_call.1} parent=1 // pred_region
      %s11 = ssub.s32 256, 256
      %12 = vsyncadd [#allocation3], %s11
      %s13 = sshll.u32 [#allocation2], 4
      %s14 = int_to_ptr.vmem [resolvable:$true] %s13
      %19 = dma.hbm_to_vmem [thread:$0]  %s0, 256, %s14, [#allocation3], 128, 128, 8
    $region5: #{tpu_custom_call.1} parent=1 // pred_fallthru
      _
    // Predicated region
    $region6: #{tpu_custom_call.1} parent=1 // pred_check
      _
    $region7: #{tpu_custom_call.1} parent=1 // pred_check_branch
      %21 = sbr.rel (0) target = $region9
    $region8: #{tpu_custom_call.1} parent=1 // pred_region
      %22 = dma.done [#allocation3], 256
    $region9: #{tpu_custom_call.1} parent=1 // pred_fallthru
      _
    %v23 = vld [vmem:[#allocation2] sm:$0xff]
    %v24 = vld [vmem:[#allocation2 + $0x8] sm:$0xff]
    %v25 = vrot.slane %v23, 7
    %v26 = vrot.slane %v24, 7
    %v27 = vlaneseq
    %v28 = vshrl.u32 %v27, 7
    %vm29 = vcmp.lt.s32.totalorder %v28, 1
    %v30 = vsel %vm29, %v25, %v26
    %v31 = vsel %vm29, %v26, %v25
    %32 = vst [vmem:[#allocation5] sm:$0xff] %v31
    %33 = vst [vmem:[#allocation5 + $0x8] sm:$0xff] %v30
    // Predicated region
    $region10: #{tpu_custom_call.1} parent=1 // pred_check
      _
    $region11: #{tpu_custom_call.1} parent=1 // pred_check_branch
      %35 = sbr.rel (0) target = $region13
    $region12: #{tpu_custom_call.1} parent=1 // pred_region
      %s37 = ssub.s32 256, 256
      %38 = vsyncadd [#allocation4], %s37
      %s39 = sshll.u32 [#allocation5], 4
      %s40 = int_to_ptr.vmem [resolvable:$true] %s39
      %45 = dma.vmem_to_hbm [thread:$0]  %s40, 256, %s1, [#allocation4], 128, 128, 8
    $region13: #{tpu_custom_call.1} parent=1 // pred_fallthru
      _
    // Predicated region
    $region14: #{tpu_custom_call.1} parent=1 // pred_check
      _
    $region15: #{tpu_custom_call.1} parent=1 // pred_check_branch
      %47 = sbr.rel (0) target = $region17
    $region16: #{tpu_custom_call.1} parent=1 // pred_region
      %48 = dma.done [#allocation4], 256
    $region17: #{tpu_custom_call.1} parent=1 // pred_fallthru
      _
    %49 = vsyncpa [#allocation3], 1
    %50 = vsyncpa [#allocation4], 1

// kernel: tpu_custom_call.1
$region0: #{tpu_custom_call.1}
  #allocation0 [shape = 'u32[]', space=smem, size = 0x4, offset = 0x4, fixed_abs, tag = 'smem constant byte address 0x4 - core index']
  #allocation1 [shape = 'u32[144,128]{1,0:T(1,128)}', space=vmem, size = 0x12000, scoped, tag = 'internal scratch']
  %s0 = inlined_call_operand.hbm [shape: f32[2,16,64], index: 0, kind: input, shape index: {}]
  %s1 = inlined_call_operand.hbm [shape: f32[192,128], index: 1, kind: input, shape index: {}]
  %s2 = inlined_call_operand.vmem [shape: f32[1,128], index: 2, kind: input, shape index: {}]
  %s3 = inlined_call_operand.hbm [shape: f32[384,128], index: 3, kind: input, shape index: {}]
  %s4 = inlined_call_operand.vmem [shape: f32[1,128], index: 4, kind: input, shape index: {}]
  %s5 = inlined_call_operand.hbm [shape: f32[2,16,128], index: 5, kind: output, shape index: {}]
  %s6 = sld [smem:[#allocation0]]
  $region42: #{tpu_custom_call.1} parent=0
    _
  %s8 = ssub.s32 1, %s6
  %s9 = scalar_select 0, %s8, %s6
  $region1: #{tpu_custom_call.1} parent=0
    #allocation2 [shape = 'u8[16384]{0}', space=vmem, size = 0x4000, scoped, tag = 'input window, operand 0, single buffered']
    #allocation3 [shape = 's32[1]{0}', space=sflag, size = 0x4, scoped, tag = 'scoped memory for tpu_custom_call.1']
    #allocation4 [shape = 's32[1]{0}', space=sflag, size = 0x4, scoped, tag = 'scoped memory for tpu_custom_call.1']
    #allocation5 [shape = 'u8[98304]{0}', space=vmem, size = 0x18000, scoped, tag = 'input window, operand 1, single buffered']
    #allocation6 [shape = 's32[1]{0}', space=sflag, size = 0x4, scoped, tag = 'scoped memory for tpu_custom_call.1']
    #allocation7 [shape = 'u8[196608]{0}', space=vmem, size = 0x30000, scoped, tag = 'input window, operand 3, single buffered']
    #allocation8 [shape = 'u8[16384]{0}', space=vmem, size = 0x4000, scoped, tag = 'output window, operand 0, single buffered']
    %10 = vsyncpa [#allocation3], 0
    %11 = vsyncpa [#allocation6], 0
    %12 = vsyncpa [#allocation4], 0
    // Predicated region
    $region2: #{tpu_custom_call.1} parent=1 // pred_check
      _
    $region3: #{tpu_custom_call.1} parent=1 // pred_check_branch
      %14 = sbr.rel (0) target = $region5
    $region4: #{tpu_custom_call.1} parent=1 // pred_region
      %s16 = ssub.s32 512, 512
      %17 = vsyncadd [#allocation3], %s16
      %s18 = sshll.u32 [#allocation2], 4
      %s19 = int_to_ptr.vmem [resolvable:$true] %s18
      %24 = dma.hbm_to_vmem [thread:$0]  %s0, 512, %s19, [#allocation3], 128, 128, 8
    $region5: #{tpu_custom_call.1} parent=1 // pred_fallthru
      _
    // Predicated region
    $region6: #{tpu_custom_call.1} parent=1 // pred_check
      _
    $region7: #{tpu_custom_call.1} parent=1 // pred_check_branch
      %26 = sbr.rel (0) target = $region9
    $region8: #{tpu_custom_call.1} parent=1 // pred_region
      %s28 = ssub.s32 3072, 3072
      %29 = vsyncadd [#allocation6], %s28
      %s30 = sshll.u32 [#allocation5], 4
      %s31 = int_to_ptr.vmem [resolvable:$true] %s30
      %36 = dma.hbm_to_vmem [thread:$0]  %s1, 3072, %s31, [#allocation6], 128, 128, 8
    $region9: #{tpu_custom_call.1} parent=1 // pred_fallthru
      _
    // Predicated region
    $region10: #{tpu_custom_call.1} parent=1 // pred_check
      _
    $region11: #{tpu_custom_call.1} parent=1 // pred_check_branch
      %38 = sbr.rel (0) target = $region13
    $region12: #{tpu_custom_call.1} parent=1 // pred_region
      _
    $region13: #{tpu_custom_call.1} parent=1 // pred_fallthru
      _
    // Predicated region
    $region14: #{tpu_custom_call.1} parent=1 // pred_check
      _
    $region15: #{tpu_custom_call.1} parent=1 // pred_check_branch
      %40 = sbr.rel (0) target = $region17
    $region16: #{tpu_custom_call.1} parent=1 // pred_region
      %s42 = ssub.s32 6144, 6144
      %43 = vsyncadd [#allocation6], %s42
      %s44 = sshll.u32 [#allocation7], 4
      %s45 = int_to_ptr.vmem [resolvable:$true] %s44
      %50 = dma.hbm_to_vmem [thread:$0]  %s3, 6144, %s45, [#allocation6], 128, 128, 8
    $region17: #{tpu_custom_call.1} parent=1 // pred_fallthru
      _
    // Predicated region
    $region18: #{tpu_custom_call.1} parent=1 // pred_check
      _
    $region19: #{tpu_custom_call.1} parent=1 // pred_check_branch
      %52 = sbr.rel (0) target = $region21
    $region20: #{tpu_custom_call.1} parent=1 // pred_region
      _
    $region21: #{tpu_custom_call.1} parent=1 // pred_fallthru
      _
    // Predicated region
    $region22: #{tpu_custom_call.1} parent=1 // pred_check
      _
    $region23: #{tpu_custom_call.1} parent=1 // pred_check_branch
      %54 = sbr.rel (0) target = $region25
    $region24: #{tpu_custom_call.1} parent=1 // pred_region
      %55 = dma.done [#allocation3], 512
    $region25: #{tpu_custom_call.1} parent=1 // pred_fallthru
      _
    // Predicated region
    $region26: #{tpu_custom_call.1} parent=1 // pred_check
      _
    $region27: #{tpu_custom_call.1} parent=1 // pred_check_branch
      %57 = sbr.rel (0) target = $region29
    $region28: #{tpu_custom_call.1} parent=1 // pred_region
      %58 = dma.done [#allocation6], 3072
    $region29: #{tpu_custom_call.1} parent=1 // pred_fallthru
      _
    // Predicated region
    $region30: #{tpu_custom_call.1} parent=1 // pred_check
      _
    $region31: #{tpu_custom_call.1} parent=1 // pred_check_branch
      %60 = sbr.rel (0) target = $region33
    $region32: #{tpu_custom_call.1} parent=1 // pred_region
      %61 = dma.done [#allocation6], 6144
    $region33: #{tpu_custom_call.1} parent=1 // pred_fallthru
      _
    %v62 = vld [vmem:[#allocation2] sm:$0xff]
    %v63 = vld [vmem:[#allocation2 + $0x8] sm:$0xff]
    %v64 = vld [vmem:[#allocation2 + $0x10] sm:$0xff]
    %v65 = vld [vmem:[#allocation2 + $0x18] sm:$0xff]
    %v66 = vlaneseq
    %v67 = vshrl.u32 %v66, 7
    %v68 = vadd.s32 %v67, 8
    %v69 = vadd.s32 %v67, 16
    %v70 = vadd.s32 %v67, 24
    %vm71 = vcmp.lt.s32.totalorder %v67, 0
    %v72 = vsub.s32 0, %v67
    %v73 = vsel %vm71, %v72, %v67
    %v74 = vshrl.u32 %v73, 4
    %v75 = vand.u32 %v73, 15
    %v76 = vsub.s32 0, %v75
    %v77 = vsel %vm71, %v76, %v75
    %vm78 = vcmp.lt.s32.totalorder %v68, 0
    %v79 = vsub.s32 0, %v68
    %v80 = vsel %vm78, %v79, %v68
    %v81 = vshrl.u32 %v80, 4
    %v82 = vand.u32 %v80, 15
    %v83 = vsub.s32 0, %v82
    %v84 = vsel %vm78, %v83, %v82
    %vm85 = vcmp.lt.s32.totalorder %v69, 0
    %v86 = vsub.s32 0, %v69
    %v87 = vsel %vm85, %v86, %v69
    %v88 = vshrl.u32 %v87, 4
    %v89 = vand.u32 %v87, 15
    %v90 = vsub.s32 0, %v89
    %v91 = vsel %vm85, %v90, %v89
    %vm92 = vcmp.lt.s32.totalorder %v70, 0
    %v93 = vsub.s32 0, %v70
    %v94 = vsel %vm92, %v93, %v70
    %v95 = vshrl.u32 %v94, 4
    %v96 = vand.u32 %v94, 15
    %v97 = vsub.s32 0, %v96
    %v98 = vsel %vm92, %v97, %v96
    %vm99 = vcmp.ne.s32.totalorder %v77, 0
    %vm100 = vcmp.ne.s32.totalorder %v84, 0
    %vm101 = vcmp.ne.s32.totalorder %v91, 0
    %vm102 = vcmp.ne.s32.totalorder %v98, 0
    %vm103 = vcmp.lt.s32.totalorder %v77, 0
    %vm104 = vcmp.lt.s32.totalorder %v84, 0
    %vm105 = vcmp.lt.s32.totalorder %v91, 0
    %vm106 = vcmp.lt.s32.totalorder %v98, 0
    %vm107 = vmand %vm103, %vm99
    %vm108 = vmand %vm104, %vm100
    %vm109 = vmand %vm105, %vm101
    %vm110 = vmand %vm106, %vm102
    %v111 = vadd.s32 %v77, 16
    %v112 = vadd.s32 %v84, 16
    %v113 = vadd.s32 %v91, 16
    %v114 = vadd.s32 %v98, 16
    %v115 = vsel %vm107, %v111, %v77
    %v116 = vsel %vm108, %v112, %v84
    %v117 = vsel %vm109, %v113, %v91
    %v118 = vsel %vm110, %v114, %v98
    %vm119 = vcmp.eq.s32.totalorder %v115, 0
    %vm120 = vcmp.eq.s32.totalorder %v116, 0
    %vm121 = vcmp.eq.s32.totalorder %v117, 0
    %vm122 = vcmp.eq.s32.totalorder %v118, 0
    %v124 = vrot.slane %v65, 7
    %vm129 = vcmask 1040384
    %v130 = vrot.slane %v62, 7
    %v131 = vrot.slane %v63, 7
    %v132 = vsel %vm129, %v130, %v131
    %v133 = vrot.slane %v64, 7
    %v134 = vsel %vm129, %v131, %v133
    %v135 = vsel %vm129, %v133, %v124
    %v140 = vsel %vm129, %v124, %v130
    %v141 = vsel %vm119, 0.0, %v140
    %v142 = vsel %vm120, 0.0, %v132
    %v143 = vsel %vm121, 0.0, %v134
    %v144 = vsel %vm122, 0.0, %v135
    %vm145 = vcmp.eq.s32.totalorder %v115, 15
    %vm146 = vcmp.eq.s32.totalorder %v116, 15
    %vm147 = vcmp.eq.s32.totalorder %v117, 15
    %vm148 = vcmp.eq.s32.totalorder %v118, 15
    %vm149 = vcmask 1046528
    %v150 = vrot.slane %v62, 1
    %v151 = vrot.slane %v63, 1
    %v152 = vsel %vm149, %v150, %v151
    %v153 = vrot.slane %v64, 1
    %v154 = vsel %vm149, %v151, %v153
    %v155 = vrot.slane %v65, 1
    %v156 = vsel %vm149, %v153, %v155
    %v162 = vsel %vm149, %v155, %v150
    %v163 = vsel %vm145, 0.0, %v152
    %v164 = vsel %vm146, 0.0, %v154
    %v165 = vsel %vm147, 0.0, %v156
    %v166 = vsel %vm148, 0.0, %v162
    %167 = vrot.lane.b32.xlu0 %v62, 64
    %v168 = vpop.permute.xlu0 %167
    %169 = vrot.lane.b32.xlu0 %v63, 64
    %v170 = vpop.permute.xlu0 %169
    %171 = vrot.lane.b32.xlu0 %v64, 64
    %v172 = vpop.permute.xlu0 %171
    %173 = vrot.lane.b32.xlu0 %v65, 64
    %v174 = vpop.permute.xlu0 %173
    %vm179 = vcmask 523264
    %v180 = vsel %vm179, %v141, %v168
    %v181 = vsel %vm179, %v142, %v170
    %v182 = vsel %vm179, %v143, %v172
    %v183 = vsel %vm179, %v144, %v174
    %v184 = vld [vmem:[#allocation5] sm:$0xff]
    %v185 = vld [vmem:[#allocation5 + $0x8] sm:$0xff]
    %v186 = vld [vmem:[#allocation5 + $0x10] sm:$0xff]
    %v187 = vld [vmem:[#allocation5 + $0x18] sm:$0xff]
    %v188 = vld [vmem:[#allocation5 + $0x20] sm:$0xff]
    %v189 = vld [vmem:[#allocation5 + $0x28] sm:$0xff]
    %v190 = vld [vmem:[#allocation5 + $0x30] sm:$0xff]
    %v191 = vld [vmem:[#allocation5 + $0x38] sm:$0xff]
    %v192 = vld [vmem:[#allocation5 + $0x40] sm:$0xff]
    %v193 = vld [vmem:[#allocation5 + $0x48] sm:$0xff]
    %v194 = vld [vmem:[#allocation5 + $0x50] sm:$0xff]
    %v195 = vld [vmem:[#allocation5 + $0x58] sm:$0xff]
    %v196 = vld [vmem:[#allocation5 + $0x60] sm:$0xff]
    %v197 = vld [vmem:[#allocation5 + $0x68] sm:$0xff]
    %v198 = vld [vmem:[#allocation5 + $0x70] sm:$0xff]
    %v199 = vld [vmem:[#allocation5 + $0x78] sm:$0xff]
    %v200 = vld [vmem:[#allocation5 + $0x80] sm:$0xff]
    %v201 = vld [vmem:[#allocation5 + $0x88] sm:$0xff]
    %v202 = vld [vmem:[#allocation5 + $0x90] sm:$0xff]
    %v203 = vld [vmem:[#allocation5 + $0x98] sm:$0xff]
    %v204 = vld [vmem:[#allocation5 + $0xa0] sm:$0xff]
    %v205 = vld [vmem:[#allocation5 + $0xa8] sm:$0xff]
    %v206 = vld [vmem:[#allocation5 + $0xb0] sm:$0xff]
    %v207 = vld [vmem:[#allocation5 + $0xb8] sm:$0xff]
    %v208 = vld [vmem:[%s2] sm:$0x1]
    %v210 = vlaneseq
    %v211 = vshrl.u32 %v210, 7
    %v212 = vsub.s32 0, %v211
    %v213 = vrot.slane %v208, %v212
    %v216 = vsel %vm179, %v163, 0
    %v219 = vsel %vm179, %v164, 0
    %v222 = vsel %vm179, %v165, 0
    %v225 = vsel %vm179, %v166, 0
    %227 = vmatprep.subr.mxu0 0.0
    %228 = vmatpush1.msra.mxu0 %v184
    %229 = vmatprep.subr.mxu0 0.0
    %230 = vmatpush1.msra.mxu0 %v185
    %231 = vmatprep.subr.mxu0 0.0
    %232 = vmatpush1.msra.mxu0 %v186
    %233 = vmatprep.subr.mxu0 0.0
    %234 = vmatpush1.msra.mxu0 %v187
    %235 = vmatprep.subr.mxu0 0.0
    %236 = vmatpush1.msra.mxu0 %v188
    %237 = vmatprep.subr.mxu0 0.0
    %238 = vmatpush1.msra.mxu0 %v189
    %239 = vmatprep.subr.mxu0 0.0
    %240 = vmatpush1.msra.mxu0 %v190
    %241 = vmatprep.subr.mxu0 0.0
    %242 = vmatpush1.msra.mxu0 %v191
    %243 = vmatprep.subr.mxu0 0.0
    %244 = vmatpush1.msra.mxu0 %v192
    %245 = vmatprep.subr.mxu0 0.0
    %246 = vmatpush1.msra.mxu0 %v193
    %247 = vmatprep.subr.mxu0 0.0
    %248 = vmatpush1.msra.mxu0 %v194
    %249 = vmatprep.subr.mxu0 0.0
    %250 = vmatpush1.msra.mxu0 %v195
    %251 = vmatprep.subr.mxu0 0.0
    %252 = vmatpush1.msra.mxu0 %v196
    %253 = vmatprep.subr.mxu0 0.0
    %254 = vmatpush1.msra.mxu0 %v197
    %255 = vmatprep.subr.mxu0 0.0
    %256 = vmatpush1.msra.mxu0 %v198
    %257 = vmatprep.subr.mxu0 0.0
    %258 = vmatpush1.msra.mxu0 %v199
    %259 = vmatprep.subr.mxu0 0.0
    %260 = vmatpush1.msra.mxu0 %v200
    %261 = vmatprep.subr.mxu0 0.0
    %262 = vmatpush1.msra.mxu0 %v201
    %263 = vmatprep.subr.mxu0 0.0
    %264 = vmatpush1.msra.mxu0 %v202
    %265 = vmatprep.subr.mxu0 0.0
    %266 = vmatpush1.msra.mxu0 %v203
    %267 = vmatprep.subr.mxu0 0.0
    %268 = vmatpush1.msra.mxu0 %v204
    %269 = vmatprep.subr.mxu0 0.0
    %270 = vmatpush1.msra.mxu0 %v205
    %271 = vmatprep.subr.mxu0 0.0
    %272 = vmatpush1.msra.mxu0 %v206
    %273 = vmatprep.subr.mxu0 0.0
    %274 = vmatpush1.msra.mxu0 %v207
    %275 = vmatprep.subr.mxu0 0.0
    %276 = vmatpush1.msra.mxu0 0.0
    %277 = vmatprep.subr.mxu0 0.0
    %278 = vmatpush1.msra.mxu0 0.0
    %279 = vmatprep.subr.mxu0 0.0
    %280 = vmatpush1.msra.mxu0 0.0
    %281 = vmatprep.subr.mxu0 0.0
    %282 = vmatpush1.msra.mxu0 0.0
    %283 = vmatprep.subr.mxu0 0.0
    %284 = vmatpush1.msra.mxu0 0.0
    %285 = vmatprep.subr.mxu0 0.0
    %286 = vmatpush1.msra.mxu0 0.0
    %287 = vmatprep.subr.mxu0 0.0
    %288 = vmatpush1.msra.mxu0 0.0
    %289 = vmatprep.subr.mxu0 0.0
    %290 = vmatpush1.msra.mxu0 0.0
    %291 = vmatprep.mubr.f32.mxu0 %v216
    %292 = vmatmul.mubr.f32.gmra.mrb[0].mxu0 %v180
    %v293 = vpop.f32.mrb[0].mxu0
    %v294 = vadd.f32 %v213, %v293
    %v295 = vpop.f32.mrb[0].mxu0
    %296 = vmatprep.mubr.f32.mxu0 %v219
    %297 = vmatmul.mubr.f32.gmra.mrb[0].mxu0 %v181
    %v298 = vpop.f32.mrb[0].mxu0
    %v299 = vadd.f32 %v213, %v298
    %v300 = vpop.f32.mrb[0].mxu0
    %301 = vmatprep.mubr.f32.mxu0 %v222
    %302 = vmatmul.mubr.f32.gmra.mrb[0].mxu0 %v182
    %v303 = vpop.f32.mrb[0].mxu0
    %v304 = vadd.f32 %v213, %v303
    %v305 = vpop.f32.mrb[0].mxu0
    %306 = vmatprep.mubr.f32.mxu0 %v225
    %307 = vmatmul.mubr.f32.gmra.mrb[0].mxu0 %v183
    %v308 = vpop.f32.mrb[0].mxu0
    %v309 = vadd.f32 %v213, %v308
    %v310 = vpop.f32.mrb[0].mxu0
    %311 = vdwg.mxu0
    %v312 = vmax.f32 %v294, 0.0
    %v313 = vmax.f32 %v299, 0.0
    %v314 = vmax.f32 %v304, 0.0
    %v315 = vmax.f32 %v309, 0.0
    %v317 = vrot.slane %v315, 7
    %v322 = vrot.slane %v312, 7
    %v323 = vrot.slane %v313, 7
    %v324 = vsel %vm129, %v322, %v323
    %v325 = vrot.slane %v314, 7
    %v326 = vsel %vm129, %v323, %v325
    %v327 = vsel %vm129, %v325, %v317
    %v332 = vsel %vm129, %v317, %v322
    %v333 = vsel %vm119, 0.0, %v332
    %v334 = vsel %vm120, 0.0, %v324
    %v335 = vsel %vm121, 0.0, %v326
    %v336 = vsel %vm122, 0.0, %v327
    %v337 = vrot.slane %v312, 1
    %v338 = vrot.slane %v313, 1
    %v339 = vsel %vm149, %v337, %v338
    %v340 = vrot.slane %v314, 1
    %v341 = vsel %vm149, %v338, %v340
    %v342 = vrot.slane %v315, 1
    %v343 = vsel %vm149, %v340, %v342
    %v349 = vsel %vm149, %v342, %v337
    %v350 = vsel %vm145, 0.0, %v339
    %v351 = vsel %vm146, 0.0, %v341
    %v352 = vsel %vm147, 0.0, %v343
    %v353 = vsel %vm148, 0.0, %v349
    %v354 = vld [vmem:[#allocation7] sm:$0xff]
    %v355 = vld [vmem:[#allocation7 + $0x8] sm:$0xff]
    %v356 = vld [vmem:[#allocation7 + $0x10] sm:$0xff]
    %v357 = vld [vmem:[#allocation7 + $0x18] sm:$0xff]
    %v358 = vld [vmem:[#allocation7 + $0x20] sm:$0xff]
    %v359 = vld [vmem:[#allocation7 + $0x28] sm:$0xff]
    %v360 = vld [vmem:[#allocation7 + $0x30] sm:$0xff]
    %v361 = vld [vmem:[#allocation7 + $0x38] sm:$0xff]
    %v362 = vld [vmem:[#allocation7 + $0x40] sm:$0xff]
    %v363 = vld [vmem:[#allocation7 + $0x48] sm:$0xff]
    %v364 = vld [vmem:[#allocation7 + $0x50] sm:$0xff]
    %v365 = vld [vmem:[#allocation7 + $0x58] sm:$0xff]
    %v366 = vld [vmem:[#allocation7 + $0x60] sm:$0xff]
    %v367 = vld [vmem:[#allocation7 + $0x68] sm:$0xff]
    %v368 = vld [vmem:[#allocation7 + $0x70] sm:$0xff]
    %v369 = vld [vmem:[#allocation7 + $0x78] sm:$0xff]
    %v370 = vld [vmem:[#allocation7 + $0x80] sm:$0xff]
    %v371 = vld [vmem:[#allocation7 + $0x88] sm:$0xff]
    %v372 = vld [vmem:[#allocation7 + $0x90] sm:$0xff]
    %v373 = vld [vmem:[#allocation7 + $0x98] sm:$0xff]
    %v374 = vld [vmem:[#allocation7 + $0xa0] sm:$0xff]
    %v375 = vld [vmem:[#allocation7 + $0xa8] sm:$0xff]
    %v376 = vld [vmem:[#allocation7 + $0xb0] sm:$0xff]
    %v377 = vld [vmem:[#allocation7 + $0xb8] sm:$0xff]
    %v378 = vld [vmem:[#allocation7 + $0xc0] sm:$0xff]
    %v379 = vld [vmem:[#allocation7 + $0xc8] sm:$0xff]
    %v380 = vld [vmem:[#allocation7 + $0xd0] sm:$0xff]
    %v381 = vld [vmem:[#allocation7 + $0xd8] sm:$0xff]
    %v382 = vld [vmem:[#allocation7 + $0xe0] sm:$0xff]
    %v383 = vld [vmem:[#allocation7 + $0xe8] sm:$0xff]
    %v384 = vld [vmem:[#allocation7 + $0xf0] sm:$0xff]
    %v385 = vld [vmem:[#allocation7 + $0xf8] sm:$0xff]
    %v386 = vld [vmem:[#allocation7 + $0x100] sm:$0xff]
    %v387 = vld [vmem:[#allocation7 + $0x108] sm:$0xff]
    %v388 = vld [vmem:[#allocation7 + $0x110] sm:$0xff]
    %v389 = vld [vmem:[#allocation7 + $0x118] sm:$0xff]
    %v390 = vld [vmem:[#allocation7 + $0x120] sm:$0xff]
    %v391 = vld [vmem:[#allocation7 + $0x128] sm:$0xff]
    %v392 = vld [vmem:[#allocation7 + $0x130] sm:$0xff]
    %v393 = vld [vmem:[#allocation7 + $0x138] sm:$0xff]
    %v394 = vld [vmem:[#allocation7 + $0x140] sm:$0xff]
    %v395 = vld [vmem:[#allocation7 + $0x148] sm:$0xff]
    %v396 = vld [vmem:[#allocation7 + $0x150] sm:$0xff]
    %v397 = vld [vmem:[#allocation7 + $0x158] sm:$0xff]
    %v398 = vld [vmem:[#allocation7 + $0x160] sm:$0xff]
    %v399 = vld [vmem:[#allocation7 + $0x168] sm:$0xff]
    %v400 = vld [vmem:[#allocation7 + $0x170] sm:$0xff]
    %v401 = vld [vmem:[#allocation7 + $0x178] sm:$0xff]
    %v402 = vld [vmem:[%s4] sm:$0x1]
    %v404 = vlaneseq
    %v405 = vshrl.u32 %v404, 7
    %v406 = vsub.s32 0, %v405
    %v407 = vrot.slane %v402, %v406
    %409 = vmatprep.subr.mxu0 0.0
    %410 = vmatpush1.msra.mxu0 %v354
    %411 = vmatprep.subr.mxu0 0.0
    %412 = vmatpush1.msra.mxu0 %v355
    %413 = vmatprep.subr.mxu0 0.0
    %414 = vmatpush1.msra.mxu0 %v356
    %415 = vmatprep.subr.mxu0 0.0
    %416 = vmatpush1.msra.mxu0 %v357
    %417 = vmatprep.subr.mxu0 0.0
    %418 = vmatpush1.msra.mxu0 %v358
    %419 = vmatprep.subr.mxu0 0.0
    %420 = vmatpush1.msra.mxu0 %v359
    %421 = vmatprep.subr.mxu0 0.0
    %422 = vmatpush1.msra.mxu0 %v360
    %423 = vmatprep.subr.mxu0 0.0
    %424 = vmatpush1.msra.mxu0 %v361
    %425 = vmatprep.subr.mxu0 0.0
    %426 = vmatpush1.msra.mxu0 %v362
    %427 = vmatprep.subr.mxu0 0.0
    %428 = vmatpush1.msra.mxu0 %v363
    %429 = vmatprep.subr.mxu0 0.0
    %430 = vmatpush1.msra.mxu0 %v364
    %431 = vmatprep.subr.mxu0 0.0
    %432 = vmatpush1.msra.mxu0 %v365
    %433 = vmatprep.subr.mxu0 0.0
    %434 = vmatpush1.msra.mxu0 %v366
    %435 = vmatprep.subr.mxu0 0.0
    %436 = vmatpush1.msra.mxu0 %v367
    %437 = vmatprep.subr.mxu0 0.0
    %438 = vmatpush1.msra.mxu0 %v368
    %439 = vmatprep.subr.mxu0 0.0
    %440 = vmatpush1.msra.mxu0 %v369
    %441 = vmatprep.subr.mxu0 0.0
    %442 = vmatpush1.msra.mxu0 %v370
    %443 = vmatprep.subr.mxu0 0.0
    %444 = vmatpush1.msra.mxu0 %v371
    %445 = vmatprep.subr.mxu0 0.0
    %446 = vmatpush1.msra.mxu0 %v372
    %447 = vmatprep.subr.mxu0 0.0
    %448 = vmatpush1.msra.mxu0 %v373
    %449 = vmatprep.subr.mxu0 0.0
    %450 = vmatpush1.msra.mxu0 %v374
    %451 = vmatprep.subr.mxu0 0.0
    %452 = vmatpush1.msra.mxu0 %v375
    %453 = vmatprep.subr.mxu0 0.0
    %454 = vmatpush1.msra.mxu0 %v376
    %455 = vmatprep.subr.mxu0 0.0
    %456 = vmatpush1.msra.mxu0 %v377
    %457 = vmatprep.subr.mxu0 0.0
    %458 = vmatpush1.msra.mxu0 %v378
    %459 = vmatprep.subr.mxu0 0.0
    %460 = vmatpush1.msra.mxu0 %v379
    %461 = vmatprep.subr.mxu0 0.0
    %462 = vmatpush1.msra.mxu0 %v380
    %463 = vmatprep.subr.mxu0 0.0
    %464 = vmatpush1.msra.mxu0 %v381
    %465 = vmatprep.subr.mxu0 0.0
    %466 = vmatpush1.msra.mxu0 %v382
    %467 = vmatprep.subr.mxu0 0.0
    %468 = vmatpush1.msra.mxu0 %v383
    %469 = vmatprep.subr.mxu0 0.0
    %470 = vmatpush1.msra.mxu0 %v384
    %471 = vmatprep.subr.mxu0 0.0
    %472 = vmatpush1.msra.mxu0 %v385
    %473 = vmatprep.mubr.f32.mxu0 %v312
    %474 = vmatmul.mubr.f32.gmra.mrb[0].mxu0 %v333
    %v475 = vpop.f32.mrb[0].mxu0
    %v476 = vadd.f32 %v407, %v475
    %v477 = vpop.f32.mrb[0].mxu0
    %478 = vmatprep.mubr.f32.mxu0 %v313
    %479 = vmatmul.mubr.f32.gmra.mrb[0].mxu0 %v334
    %v480 = vpop.f32.mrb[0].mxu0
    %v481 = vadd.f32 %v407, %v480
    %v482 = vpop.f32.mrb[0].mxu0
    %483 = vmatprep.mubr.f32.mxu0 %v314
    %484 = vmatmul.mubr.f32.gmra.mrb[0].mxu0 %v335
    %v485 = vpop.f32.mrb[0].mxu0
    %v486 = vadd.f32 %v407, %v485
    %v487 = vpop.f32.mrb[0].mxu0
    %488 = vmatprep.mubr.f32.mxu0 %v315
    %489 = vmatmul.mubr.f32.gmra.mrb[0].mxu0 %v336
    %v490 = vpop.f32.mrb[0].mxu0
    %v491 = vadd.f32 %v407, %v490
    %v492 = vpop.f32.mrb[0].mxu0
    %493 = vdwg.mxu0
    %494 = vmatprep.subr.mxu0 0.0
    %495 = vmatpush1.msra.mxu0 %v386
    %496 = vmatprep.subr.mxu0 0.0
    %497 = vmatpush1.msra.mxu0 %v387
    %498 = vmatprep.subr.mxu0 0.0
    %499 = vmatpush1.msra.mxu0 %v388
    %500 = vmatprep.subr.mxu0 0.0
    %501 = vmatpush1.msra.mxu0 %v389
    %502 = vmatprep.subr.mxu0 0.0
    %503 = vmatpush1.msra.mxu0 %v390
    %504 = vmatprep.subr.mxu0 0.0
    %505 = vmatpush1.msra.mxu0 %v391
    %506 = vmatprep.subr.mxu0 0.0
    %507 = vmatpush1.msra.mxu0 %v392
    %508 = vmatprep.subr.mxu0 0.0
    %509 = vmatpush1.msra.mxu0 %v393
    %510 = vmatprep.subr.mxu0 0.0
    %511 = vmatpush1.msra.mxu0 %v394
    %512 = vmatprep.subr.mxu0 0.0
    %513 = vmatpush1.msra.mxu0 %v395
    %514 = vmatprep.subr.mxu0 0.0
    %515 = vmatpush1.msra.mxu0 %v396
    %516 = vmatprep.subr.mxu0 0.0
    %517 = vmatpush1.msra.mxu0 %v397
    %518 = vmatprep.subr.mxu0 0.0
    %519 = vmatpush1.msra.mxu0 %v398
    %520 = vmatprep.subr.mxu0 0.0
    %521 = vmatpush1.msra.mxu0 %v399
    %522 = vmatprep.subr.mxu0 0.0
    %523 = vmatpush1.msra.mxu0 %v400
    %524 = vmatprep.subr.mxu0 0.0
    %525 = vmatpush1.msra.mxu0 %v401
    %526 = vmatprep.subr.mxu0 0.0
    %527 = vmatpush1.msra.mxu0 0.0
    %528 = vmatprep.subr.mxu0 0.0
    %529 = vmatpush1.msra.mxu0 0.0
    %530 = vmatprep.subr.mxu0 0.0
    %531 = vmatpush1.msra.mxu0 0.0
    %532 = vmatprep.subr.mxu0 0.0
    %533 = vmatpush1.msra.mxu0 0.0
    %534 = vmatprep.subr.mxu0 0.0
    %535 = vmatpush1.msra.mxu0 0.0
    %536 = vmatprep.subr.mxu0 0.0
    %537 = vmatpush1.msra.mxu0 0.0
    %538 = vmatprep.subr.mxu0 0.0
    %539 = vmatpush1.msra.mxu0 0.0
    %540 = vmatprep.subr.mxu0 0.0
    %541 = vmatpush1.msra.mxu0 0.0
    %542 = vmatprep.subr.mxu0 0.0
    %543 = vmatpush1.msra.mxu0 0.0
    %544 = vmatprep.subr.mxu0 0.0
    %545 = vmatpush1.msra.mxu0 0.0
    %546 = vmatprep.subr.mxu0 0.0
    %547 = vmatpush1.msra.mxu0 0.0
    %548 = vmatprep.subr.mxu0 0.0
    %549 = vmatpush1.msra.mxu0 0.0
    %550 = vmatprep.subr.mxu0 0.0
    %551 = vmatpush1.msra.mxu0 0.0
    %552 = vmatprep.subr.mxu0 0.0
    %553 = vmatpush1.msra.mxu0 0.0
    %554 = vmatprep.subr.mxu0 0.0
    %555 = vmatpush1.msra.mxu0 0.0
    %556 = vmatprep.subr.mxu0 0.0
    %557 = vmatpush1.msra.mxu0 0.0
    %558 = vmatprep.mubr.f32.mxu0 0.0
    %559 = vmatmul.mubr.f32.gmra.mrb[0].mxu0 %v350
    %v560 = vpop.f32.mrb[0].mxu0
    %v561 = vadd.f32 %v476, %v560
    %v562 = vpop.f32.mrb[0].mxu0
    %563 = vmatprep.mubr.f32.mxu0 0.0
    %564 = vmatmul.mubr.f32.gmra.mrb[0].mxu0 %v351
    %v565 = vpop.f32.mrb[0].mxu0
    %v566 = vadd.f32 %v481, %v565
    %v567 = vpop.f32.mrb[0].mxu0
    %568 = vmatprep.mubr.f32.mxu0 0.0
    %569 = vmatmul.mubr.f32.gmra.mrb[0].mxu0 %v352
    %v570 = vpop.f32.mrb[0].mxu0
    %v571 = vadd.f32 %v486, %v570
    %v572 = vpop.f32.mrb[0].mxu0
    %573 = vmatprep.mubr.f32.mxu0 0.0
    %574 = vmatmul.mubr.f32.gmra.mrb[0].mxu0 %v353
    %v575 = vpop.f32.mrb[0].mxu0
    %v576 = vadd.f32 %v491, %v575
    %v577 = vpop.f32.mrb[0].mxu0
    %578 = vdwg.mxu0
    %v579 = vmax.f32 %v561, 0.0
    %v580 = vmax.f32 %v566, 0.0
    %v581 = vmax.f32 %v571, 0.0
    %v582 = vmax.f32 %v576, 0.0
    %583 = vst [vmem:[#allocation8] sm:$0xff] %v579
    %584 = vst [vmem:[#allocation8 + $0x8] sm:$0xff] %v580
    %585 = vst [vmem:[#allocation8 + $0x10] sm:$0xff] %v581
    %586 = vst [vmem:[#allocation8 + $0x18] sm:$0xff] %v582
    // Predicated region
    $region34: #{tpu_custom_call.1} parent=1 // pred_check
      _
    $region35: #{tpu_custom_call.1} parent=1 // pred_check_branch
      %588 = sbr.rel (0) target = $region37
    $region36: #{tpu_custom_call.1} parent=1 // pred_region
      %s590 = ssub.s32 512, 512
      %591 = vsyncadd [#allocation4], %s590
      %s592 = sshll.u32 [#allocation8], 4
      %s593 = int_to_ptr.vmem [resolvable:$true] %s592
      %598 = dma.vmem_to_hbm [thread:$0]  %s593, 512, %s5, [#allocation4], 128, 128, 8
    $region37: #{tpu_custom_call.1} parent=1 // pred_fallthru
      _
    // Predicated region
    $region38: #{tpu_custom_call.1} parent=1 // pred_check
      _
    $region39: #{tpu_custom_call.1} parent=1 // pred_check_branch
      %600 = sbr.rel (0) target = $region41
    $region40: #{tpu_custom_call.1} parent=1 // pred_region
      %601 = dma.done [#allocation4], 512
    $region41: #{tpu_custom_call.1} parent=1 // pred_fallthru
      _
    %602 = vsyncpa [#allocation3], 1
    %603 = vsyncpa [#allocation6], 1
    %604 = vsyncpa [#allocation4], 1

</llo_original>
